<compile_context>
chip_gen: v5e
topology: v5e:2x2
jax: 0.10.0
libtpu: 0.0.40
codegen_flags: <defaults>
</compile_context>

<pallas_src>
import functools

import jax
import jax.numpy as jnp
from jax import lax
from jax.experimental import pallas as pl
from jax.experimental.pallas import tpu as pltpu

_BIG = 1e9            # sentinel: masked-out pairs contribute exactly 0 after the relu
_LANE = 128           # TPU lane width: pad batch so negatives (k) are lane-dense
_ANCHOR_BLOCK = 32    # anchors per grid step in the accumulation kernel
_ROW_BLOCK_MAX = 256  # kernel-1 row tile (bounds VMEM; lets 2 TCs split the Gram matmul)
_EPS = 1e-16


def _vmem_limit_bytes():
    """Generation-aware scoped-VMEM limit (~96 MiB on v5e/v6e, ~48 MiB on v7x)."""
    cap = 64 * 1024 * 1024                     # conservative fallback (v7x physical VMEM)
    try:
        cap = int(pltpu.get_tpu_info().vmem_capacity_bytes)
    except Exception:
        pass
    return min(cap * 3 // 4, 100 * 1024 * 1024)


def _prep_kernel(emb_r_ref, emb_a_ref, lab_r_ref, lab_a_ref, ap_ref, an_ref,
                 *, margin, batch, row_block):
    """Row-strip of pairwise squared distances (MXU) + mask folding into sentinels."""
    i = pl.program_id(0)
    er = emb_r_ref[...].astype(jnp.float32)                           # (TR, D) rows of this strip
    ea = emb_a_ref[...].astype(jnp.float32)                           # (Bp, D) all embeddings

    # Gram strip without transposing: contract the feature axis of both sides.
    gram = lax.dot_general(er, ea, (((1,), (1,)), ((), ())),
                           preferred_element_type=jnp.float32)        # (TR, Bp)
    sq_r = jnp.sum(er * er, axis=1, keepdims=True)                    # (TR, 1)
    sq_a = jnp.transpose(jnp.sum(ea * ea, axis=1, keepdims=True))     # (1, Bp) (once per strip)
    dist = jnp.maximum(sq_r + sq_a - 2.0 * gram, 0.0)                 # squared=True: no sqrt

    tr, bp = dist.shape
    rid = i * row_block + lax.broadcasted_iota(jnp.int32, (tr, bp), 0)
    cid = lax.broadcasted_iota(jnp.int32, (tr, bp), 1)
    neq = rid != cid
    in_range = jnp.logical_and(rid < batch, cid < batch)              # drop padded rows/cols
    lab_eq = lab_r_ref[...] == lab_a_ref[...]                         # (TR,1)==(1,Bp) -> (TR,Bp)

    pos_valid = jnp.logical_and(jnp.logical_and(neq, lab_eq), in_range)
    neg_valid = jnp.logical_and(jnp.logical_and(neq, jnp.logical_not(lab_eq)), in_range)

    ap_ref[...] = jnp.where(pos_valid, dist + jnp.float32(margin), jnp.float32(-_BIG))
    an_ref[...] = jnp.where(neg_valid, dist, jnp.float32(_BIG))


def _accum_kernel(ap_ref, an_ref, s_ref, c_ref):
    """Per 32-anchor block: sublane-only folds, per-lane partial (sum, count) vectors."""
    ta, bp = ap_ref.shape                                    # (ANCHOR_BLOCK, Bp)

    def body(a, carry):
        s_acc, c_acc = carry
        ap_col = jnp.transpose(ap_ref[pl.ds(a, 1), :])       # (Bp, 1): d(a,j)+margin, j on sublanes
        an_row = an_ref[pl.ds(a, 1), :]                      # (1, Bp): d(a,k),        k on lanes
        diff = ap_col - an_row                               # (Bp, Bp); masks already folded
        trip = jnp.maximum(diff, 0.0)
        ind = jnp.where(diff > jnp.float32(_EPS),            # indicator off the pre-relu diff
                        jnp.float32(1.0), jnp.float32(0.0))
        # Sublane-only reductions (axis=0): vreg-vreg adds, no full cross-lane reduce.
        s_acc = s_acc + jnp.sum(trip, axis=0, keepdims=True)     # (1, Bp) per-lane partial sum
        c_acc = c_acc + jnp.sum(ind, axis=0, keepdims=True)      # (1, Bp) per-lane partial count
        return s_acc, c_acc

    init = (jnp.zeros((1, bp), jnp.float32), jnp.zeros((1, bp), jnp.float32))
    s_acc, c_acc = lax.fori_loop(0, ta, body, init, unroll=4)    # bounded vreg pressure
    s_ref[0] = s_acc                                             # lane-dense (1, Bp) writes
    c_ref[0] = c_acc


def triplet_loss(pred, target, margin=0.5):
    """pred: (B, D) float embeddings; target: (B,) integer labels."""
    B, D = pred.shape
    bp = max(_LANE, ((B + _LANE - 1) // _LANE) * _LANE)      # pad batch to a lane multiple

    emb = jnp.zeros((bp, D), jnp.float32).at[:B, :].set(pred.astype(jnp.float32))
    lab = jnp.full((bp,), -1, jnp.int32).at[:B].set(target.astype(jnp.int32))
    lab_col = lab.reshape(bp, 1)
    lab_row = lab.reshape(1, bp)

    vmem_limit = _vmem_limit_bytes()

    # ---- Kernel 1: masked pairwise distances, tiled over row strips -----------------
    tr = min(bp, _ROW_BLOCK_MAX)
    n_rblocks = bp // tr
    ap_m, an_m = pl.pallas_call(
        functools.partial(_prep_kernel, margin=float(margin), batch=B, row_block=tr),
        out_shape=(jax.ShapeDtypeStruct((bp, bp), jnp.float32),
                   jax.ShapeDtypeStruct((bp, bp), jnp.float32)),
        grid=(n_rblocks,),
        in_specs=[
            pl.BlockSpec((tr, D), lambda i: (i, 0)),         # row strip of embeddings
            pl.BlockSpec((bp, D), lambda i: (0, 0)),         # all embeddings (resident)
            pl.BlockSpec((tr, 1), lambda i: (i, 0)),         # row labels
            pl.BlockSpec((1, bp), lambda i: (0, 0)),         # all labels
        ],
        out_specs=(pl.BlockSpec((tr, bp), lambda i: (i, 0)),
                   pl.BlockSpec((tr, bp), lambda i: (i, 0))),
        compiler_params=pltpu.CompilerParams(
            dimension_semantics=("parallel",),               # v7x TCs split the Gram matmul
            vmem_limit_bytes=vmem_limit),
    )(emb, emb, lab_col, lab_row)

    # ---- Kernel 2: O(B^3) accumulation over anchor blocks ---------------------------
    # Only cover anchors that can contribute (skip all-padding anchor blocks).
    # Note: at realistic batch sizes ceil(B/32) >= 2, so the "parallel" axis still
    # splits across v7x's two TensorCores.
    n_ablocks = max(1, -(-B // _ANCHOR_BLOCK))
    s_parts, c_parts = pl.pallas_call(
        _accum_kernel,
        out_shape=(jax.ShapeDtypeStruct((n_ablocks, 1, bp), jnp.float32),
                   jax.ShapeDtypeStruct((n_ablocks, 1, bp), jnp.float32)),
        grid=(n_ablocks,),
        in_specs=[
            pl.BlockSpec((_ANCHOR_BLOCK, bp), lambda i: (i, 0)),
            pl.BlockSpec((_ANCHOR_BLOCK, bp), lambda i: (i, 0)),
        ],
        out_specs=(pl.BlockSpec((1, 1, bp), lambda i: (i, 0, 0)),
                   pl.BlockSpec((1, 1, bp), lambda i: (i, 0, 0))),
        compiler_params=pltpu.CompilerParams(
            dimension_semantics=("parallel",),
            vmem_limit_bytes=vmem_limit),
    )(ap_m, an_m)

    # Final lane reduction + division in plain f32 XLA (tiny).
    total = jnp.sum(s_parts)
    num_pos = jnp.sum(c_parts)
    return total / (num_pos + _EPS)


def _triplet_loss_ref(pred, target, margin=0.5):
    e = pred.astype(jnp.float32)
    lab = target
    dot = e @ e.T
    sq = jnp.sum(e * e, axis=-1, keepdims=True)
    dist = jnp.maximum(sq + sq.T - 2.0 * dot, 0.0)
    trip = dist[:, :, None] - dist[:, None, :] + margin
    B = e.shape[0]
    idx = jnp.arange(B)
    ne = idx[:, None] != idx[None, :]
    leq = lab[:, None] == lab[None, :]
    mask = (ne[:, :, None] & ne[:, None, :] & ne[None, :, :]
            & leq[:, :, None] & (~leq)[:, None, :]).astype(jnp.float32)
    trip = jnp.maximum(mask * trip, 0.0)
    num_pos = jnp.sum((trip > 1e-16).astype(jnp.float32))
    return jnp.sum(trip) / (num_pos + 1e-16)


if __name__ == "__main__":
    key = jax.random.PRNGKey(0)
    k1, k2 = jax.random.split(key)
    B, D = 8, 32
    pred = jax.random.normal(k1, (B, D), dtype=jnp.float32)
    target = jax.random.randint(k2, (B,), 0, 3, dtype=jnp.int32)

    loss = triplet_loss(pred, target, margin=0.5)
    jax.block_until_ready(loss)

    ref = _triplet_loss_ref(pred, target, margin=0.5)
    assert jnp.allclose(loss, ref, rtol=1e-5, atol=1e-5), (loss, ref)

    print("KERNEL_OK")
</pallas_src>

<mosaic_0001>
module attributes {stable_mosaic.version = 11 : i64} {
  func.func @_prep_kernel(%arg0: i32, %arg1: memref<128x32xf32, #tpu.memory_space<vmem>>, %arg2: memref<128x32xf32, #tpu.memory_space<vmem>>, %arg3: memref<128x1xi32, #tpu.memory_space<vmem>>, %arg4: memref<1x128xi32, #tpu.memory_space<vmem>>, %arg5: memref<128x128xf32, #tpu.memory_space<vmem>>, %arg6: memref<128x128xf32, #tpu.memory_space<vmem>>) attributes {dimension_semantics = [#tpu.dimension_semantics<parallel>], iteration_bounds = array<i64: 1>, scalar_prefetch = 0 : i64, scratch_operands = 0 : i64, tpu.core_type = #tpu.core_type<tc>, window_params = [{transform_indices = @transform_0, window_bounds = array<i64: 128, 32>}, {pipeline_mode = #tpu.pipeline_mode<synchronous>, transform_indices = @transform_1, window_bounds = array<i64: 128, 32>}, {transform_indices = @transform_2, window_bounds = array<i64: 128, 1>}, {pipeline_mode = #tpu.pipeline_mode<synchronous>, transform_indices = @transform_3, window_bounds = array<i64: 1, 128>}, {transform_indices = @transform_4, window_bounds = array<i64: 128, 128>}, {transform_indices = @transform_5, window_bounds = array<i64: 128, 128>}]} {
    %c0 = arith.constant 0 : index
    %c0_0 = arith.constant 0 : index
    %0 = vector.load %arg1[%c0, %c0_0] : memref<128x32xf32, #tpu.memory_space<vmem>>, vector<128x32xf32>
    %c0_1 = arith.constant 0 : index
    %c0_2 = arith.constant 0 : index
    %1 = vector.load %arg2[%c0_1, %c0_2] : memref<128x32xf32, #tpu.memory_space<vmem>>, vector<128x32xf32>
    %cst = arith.constant dense<0.000000e+00> : vector<128x128xf32>
    %2 = tpu.matmul %0, %1, %cst {dimension_numbers = #tpu.dot_dimension_numbers<[1], [1], [0], [0], [0, 0, 1, 0], [], []>} : vector<128x32xf32>, vector<128x32xf32>, vector<128x128xf32> -> vector<128x128xf32>
    %3 = arith.mulf %0, %0 : vector<128x32xf32>
    %cst_3 = arith.constant dense<0.000000e+00> : vector<128xf32>
    %4 = vector.multi_reduction <add>, %3, %cst_3 [1] : vector<128x32xf32> to vector<128xf32>
    %5 = vector.shape_cast %4 : vector<128xf32> to vector<128x1xf32>
    %6 = arith.mulf %1, %1 : vector<128x32xf32>
    %cst_4 = arith.constant dense<0.000000e+00> : vector<128xf32>
    %7 = vector.multi_reduction <add>, %6, %cst_4 [1] : vector<128x32xf32> to vector<128xf32>
    %8 = vector.shape_cast %7 : vector<128xf32> to vector<128x1xf32>
    %9 = tpu.transpose %8, [1, 0] : vector<128x1xf32> -> vector<1x128xf32>
    %10 = vector.broadcast %5 : vector<128x1xf32> to vector<128x128xf32>
    %11 = vector.broadcast %9 : vector<1x128xf32> to vector<128x128xf32>
    %12 = arith.addf %10, %11 : vector<128x128xf32>
    %cst_5 = arith.constant 2.000000e+00 : f32
    %13 = vector.broadcast %cst_5 : f32 to vector<128x128xf32>
    %14 = arith.mulf %13, %2 : vector<128x128xf32>
    %15 = arith.subf %12, %14 : vector<128x128xf32>
    %cst_6 = arith.constant 0.000000e+00 : f32
    %16 = vector.broadcast %cst_6 : f32 to vector<128x128xf32>
    %17 = arith.maximumf %15, %16 : vector<128x128xf32>
    %c128_i32 = arith.constant 128 : i32
    %18 = arith.muli %arg0, %c128_i32 : i32
    %19 = tpu.iota {dimensions = array<i32: 0>} : vector<128x128xi32>
    %20 = vector.broadcast %18 : i32 to vector<128x128xi32>
    %21 = arith.addi %20, %19 : vector<128x128xi32>
    %22 = tpu.iota {dimensions = array<i32: 1>} : vector<128x128xi32>
    %23 = arith.cmpi ne, %21, %22 : vector<128x128xi32>
    %c8_i32 = arith.constant 8 : i32
    %24 = vector.broadcast %c8_i32 : i32 to vector<128x128xi32>
    %25 = arith.cmpi slt, %21, %24 : vector<128x128xi32>
    %c8_i32_7 = arith.constant 8 : i32
    %26 = vector.broadcast %c8_i32_7 : i32 to vector<128x128xi32>
    %27 = arith.cmpi slt, %22, %26 : vector<128x128xi32>
    %28 = arith.andi %25, %27 : vector<128x128xi1>
    %c0_8 = arith.constant 0 : index
    %c0_9 = arith.constant 0 : index
    %29 = vector.load %arg3[%c0_8, %c0_9] : memref<128x1xi32, #tpu.memory_space<vmem>>, vector<128x1xi32>
    %c0_10 = arith.constant 0 : index
    %c0_11 = arith.constant 0 : index
    %30 = vector.load %arg4[%c0_10, %c0_11] : memref<1x128xi32, #tpu.memory_space<vmem>>, vector<1x128xi32>
    %31 = vector.broadcast %29 : vector<128x1xi32> to vector<128x128xi32>
    %32 = vector.broadcast %30 : vector<1x128xi32> to vector<128x128xi32>
    %33 = arith.cmpi eq, %31, %32 : vector<128x128xi32>
    %34 = arith.andi %23, %33 : vector<128x128xi1>
    %35 = arith.andi %34, %28 : vector<128x128xi1>
    %cst_12 = arith.constant dense<true> : vector<128x128xi1>
    %36 = arith.xori %33, %cst_12 : vector<128x128xi1>
    %37 = arith.andi %23, %36 : vector<128x128xi1>
    %38 = arith.andi %37, %28 : vector<128x128xi1>
    %cst_13 = arith.constant 5.000000e-01 : f32
    %39 = vector.broadcast %cst_13 : f32 to vector<128x128xf32>
    %40 = arith.addf %17, %39 : vector<128x128xf32>
    %cst_14 = arith.constant -1.000000e+09 : f32
    %41 = vector.broadcast %cst_14 : f32 to vector<128x128xf32>
    %42 = arith.select %35, %40, %41 : vector<128x128xi1>, vector<128x128xf32>
    %c0_15 = arith.constant 0 : index
    %c0_16 = arith.constant 0 : index
    %43 = vector.load %arg5[%c0_15, %c0_16] : memref<128x128xf32, #tpu.memory_space<vmem>>, vector<128x128xf32>
    tpu.vector_store %arg5[%c0_15, %c0_16], %42 {strides = array<i32>} : memref<128x128xf32, #tpu.memory_space<vmem>>, vector<128x128xf32>,
    %cst_17 = arith.constant 1.000000e+09 : f32
    %44 = vector.broadcast %cst_17 : f32 to vector<128x128xf32>
    %45 = arith.select %38, %17, %44 : vector<128x128xi1>, vector<128x128xf32>
    %c0_18 = arith.constant 0 : index
    %c0_19 = arith.constant 0 : index
    %46 = vector.load %arg6[%c0_18, %c0_19] : memref<128x128xf32, #tpu.memory_space<vmem>>, vector<128x128xf32>
    tpu.vector_store %arg6[%c0_18, %c0_19], %45 {strides = array<i32>} : memref<128x128xf32, #tpu.memory_space<vmem>>, vector<128x128xf32>,
    return
  }
  func.func @transform_0(%arg0: i32) -> (i32, i32) {
    %c0_i32 = arith.constant 0 : i32
    %c0_i32_0 = arith.constant 0 : i32
    return %arg0, %c0_i32 : i32, i32
  }
  func.func @transform_1(%arg0: i32) -> (i32, i32) {
    %c0_i32 = arith.constant 0 : i32
    %c0_i32_0 = arith.constant 0 : i32
    %c0_i32_1 = arith.constant 0 : i32
    return %c0_i32, %c0_i32_0 : i32, i32
  }
  func.func @transform_2(%arg0: i32) -> (i32, i32) {
    %c0_i32 = arith.constant 0 : i32
    %c0_i32_0 = arith.constant 0 : i32
    return %arg0, %c0_i32 : i32, i32
  }
  func.func @transform_3(%arg0: i32) -> (i32, i32) {
    %c0_i32 = arith.constant 0 : i32
    %c0_i32_0 = arith.constant 0 : i32
    %c0_i32_1 = arith.constant 0 : i32
    return %c0_i32, %c0_i32_0 : i32, i32
  }
  func.func @transform_4(%arg0: i32) -> (i32, i32) {
    %c0_i32 = arith.constant 0 : i32
    %c0_i32_0 = arith.constant 0 : i32
    return %arg0, %c0_i32 : i32, i32
  }
  func.func @transform_5(%arg0: i32) -> (i32, i32) {
    %c0_i32 = arith.constant 0 : i32
    %c0_i32_0 = arith.constant 0 : i32
    return %arg0, %c0_i32 : i32, i32
  }
}

</mosaic_0001>

<llo_original>
// kernel: tpu_custom_call.1
$region0: #{tpu_custom_call.1}
  #allocation0 [shape = 'u32[]', space=smem, size = 0x4, offset = 0x4, fixed_abs, tag = 'smem constant byte address 0x4 - core index']
  #allocation1 [shape = 'u32[72,128]{1,0:T(1,128)}', space=vmem, size = 0x9000, scoped, tag = 'internal scratch']
  %s0 = inlined_call_operand.vmem [shape: f32[128,32], index: 0, kind: input, shape index: {}]
  %s1 = inlined_call_operand.vmem [shape: f32[128,32], index: 1, kind: input, shape index: {}]
  %s2 = inlined_call_operand.vmem [shape: s32[128,1], index: 2, kind: input, shape index: {}]
  %s3 = inlined_call_operand.vmem [shape: s32[1,128], index: 3, kind: input, shape index: {}]
  %s4 = inlined_call_operand.hbm [shape: f32[128,128], index: 4, kind: output, shape index: {0}]
  %s5 = inlined_call_operand.hbm [shape: f32[128,128], index: 5, kind: output, shape index: {1}]
  %6 = xla_tuple %s4, %s5
  %s7 = sld [smem:[#allocation0]]
  $region34: #{tpu_custom_call.1} parent=0
    _
  %s9 = ssub.s32 1, %s7
  %s10 = scalar_select 0, %s9, %s7
  $region1: #{tpu_custom_call.1} parent=0
    #allocation2 [shape = 'u8[65536]{0}', space=vmem, size = 0x10000, scoped, tag = 'output window, operand 0, single buffered']
    #allocation3 [shape = 's32[1]{0}', space=sflag, size = 0x4, scoped, tag = 'scoped memory for tpu_custom_call.1']
    #allocation4 [shape = 'u8[65536]{0}', space=vmem, size = 0x10000, scoped, tag = 'output window, operand 1, single buffered']
    #allocation5 [shape = 's32[1]{0}', space=sflag, size = 0x4, scoped, tag = 'scoped memory for tpu_custom_call.1']
    %11 = vsyncpa [#allocation3], 0
    %12 = vsyncpa [#allocation5], 0
    // Predicated region
    $region2: #{tpu_custom_call.1} parent=1 // pred_check
      _
    $region3: #{tpu_custom_call.1} parent=1 // pred_check_branch
      %14 = sbr.rel (0) target = $region5
    $region4: #{tpu_custom_call.1} parent=1 // pred_region
      _
    $region5: #{tpu_custom_call.1} parent=1 // pred_fallthru
      _
    // Predicated region
    $region6: #{tpu_custom_call.1} parent=1 // pred_check
      _
    $region7: #{tpu_custom_call.1} parent=1 // pred_check_branch
      %16 = sbr.rel (0) target = $region9
    $region8: #{tpu_custom_call.1} parent=1 // pred_region
      _
    $region9: #{tpu_custom_call.1} parent=1 // pred_fallthru
      _
    // Predicated region
    $region10: #{tpu_custom_call.1} parent=1 // pred_check
      _
    $region11: #{tpu_custom_call.1} parent=1 // pred_check_branch
      %18 = sbr.rel (0) target = $region13
    $region12: #{tpu_custom_call.1} parent=1 // pred_region
      _
    $region13: #{tpu_custom_call.1} parent=1 // pred_fallthru
      _
    // Predicated region
    $region14: #{tpu_custom_call.1} parent=1 // pred_check
      _
    $region15: #{tpu_custom_call.1} parent=1 // pred_check_branch
      %20 = sbr.rel (0) target = $region17
    $region16: #{tpu_custom_call.1} parent=1 // pred_region
      _
    $region17: #{tpu_custom_call.1} parent=1 // pred_fallthru
      _
    %v21 = vld [vmem:[%s0] sm:$0xff]
    %v22 = vld [vmem:[%s0 + $0x8] sm:$0xff]
    %v23 = vld [vmem:[%s0 + $0x10] sm:$0xff]
    %v24 = vld [vmem:[%s0 + $0x18] sm:$0xff]
    %v25 = vld [vmem:[%s0 + $0x20] sm:$0xff]
    %v26 = vld [vmem:[%s0 + $0x28] sm:$0xff]
    %v27 = vld [vmem:[%s0 + $0x30] sm:$0xff]
    %v28 = vld [vmem:[%s0 + $0x38] sm:$0xff]
    %v29 = vld [vmem:[%s0 + $0x40] sm:$0xff]
    %v30 = vld [vmem:[%s0 + $0x48] sm:$0xff]
    %v31 = vld [vmem:[%s0 + $0x50] sm:$0xff]
    %v32 = vld [vmem:[%s0 + $0x58] sm:$0xff]
    %v33 = vld [vmem:[%s0 + $0x60] sm:$0xff]
    %v34 = vld [vmem:[%s0 + $0x68] sm:$0xff]
    %v35 = vld [vmem:[%s0 + $0x70] sm:$0xff]
    %v36 = vld [vmem:[%s0 + $0x78] sm:$0xff]
    %v37 = vld [vmem:[%s1] sm:$0xff]
    %v38 = vld [vmem:[%s1 + $0x8] sm:$0xff]
    %v39 = vld [vmem:[%s1 + $0x10] sm:$0xff]
    %v40 = vld [vmem:[%s1 + $0x18] sm:$0xff]
    %v41 = vld [vmem:[%s1 + $0x20] sm:$0xff]
    %v42 = vld [vmem:[%s1 + $0x28] sm:$0xff]
    %v43 = vld [vmem:[%s1 + $0x30] sm:$0xff]
    %v44 = vld [vmem:[%s1 + $0x38] sm:$0xff]
    %v45 = vld [vmem:[%s1 + $0x40] sm:$0xff]
    %v46 = vld [vmem:[%s1 + $0x48] sm:$0xff]
    %v47 = vld [vmem:[%s1 + $0x50] sm:$0xff]
    %v48 = vld [vmem:[%s1 + $0x58] sm:$0xff]
    %v49 = vld [vmem:[%s1 + $0x60] sm:$0xff]
    %v50 = vld [vmem:[%s1 + $0x68] sm:$0xff]
    %v51 = vld [vmem:[%s1 + $0x70] sm:$0xff]
    %v52 = vld [vmem:[%s1 + $0x78] sm:$0xff]
    %vm53 = vcmask 261120
    %v55 = vsel %vm53, %v21, 0
    %v58 = vsel %vm53, %v22, 0
    %v61 = vsel %vm53, %v23, 0
    %v64 = vsel %vm53, %v24, 0
    %v67 = vsel %vm53, %v25, 0
    %v70 = vsel %vm53, %v26, 0
    %v73 = vsel %vm53, %v27, 0
    %v76 = vsel %vm53, %v28, 0
    %v79 = vsel %vm53, %v29, 0
    %v82 = vsel %vm53, %v30, 0
    %v85 = vsel %vm53, %v31, 0
    %v88 = vsel %vm53, %v32, 0
    %v91 = vsel %vm53, %v33, 0
    %v94 = vsel %vm53, %v34, 0
    %v97 = vsel %vm53, %v35, 0
    %v100 = vsel %vm53, %v36, 0
    %v103 = vsel %vm53, %v37, 0
    %v106 = vsel %vm53, %v38, 0
    %v109 = vsel %vm53, %v39, 0
    %v112 = vsel %vm53, %v40, 0
    %v115 = vsel %vm53, %v41, 0
    %v118 = vsel %vm53, %v42, 0
    %v121 = vsel %vm53, %v43, 0
    %v124 = vsel %vm53, %v44, 0
    %v127 = vsel %vm53, %v45, 0
    %v130 = vsel %vm53, %v46, 0
    %v133 = vsel %vm53, %v47, 0
    %v136 = vsel %vm53, %v48, 0
    %v139 = vsel %vm53, %v49, 0
    %v142 = vsel %vm53, %v50, 0
    %v145 = vsel %vm53, %v51, 0
    %v148 = vsel %vm53, %v52, 0
    %150 = vmatpush.xpose.msra.mxu0 %v148
    %151 = vmatpush.xpose.msra.mxu0 %v145
    %152 = vmatpush.xpose.msra.mxu0 %v142
    %153 = vmatpush.xpose.msra.mxu0 %v139
    %154 = vmatpush.xpose.msra.mxu0 %v136
    %155 = vmatpush.xpose.msra.mxu0 %v133
    %156 = vmatpush.xpose.msra.mxu0 %v130
    %157 = vmatpush.xpose.msra.mxu0 %v127
    %158 = vmatpush.xpose.msra.mxu0 %v124
    %159 = vmatpush.xpose.msra.mxu0 %v121
    %160 = vmatpush.xpose.msra.mxu0 %v118
    %161 = vmatpush.xpose.msra.mxu0 %v115
    %162 = vmatpush.xpose.msra.mxu0 %v112
    %163 = vmatpush.xpose.msra.mxu0 %v109
    %164 = vmatpush.xpose.msra.mxu0 %v106
    %165 = vmatpush.xpose.msra.mxu0 %v103
    %166 = vmatmul.f32.gmra.mxu0 %v55
    %v167 = vpop.f32.mrf.mxu0
    %v168 = vadd.f32 0.0, %v167
    %169 = vmatmul.f32.gmra.mxu0 %v58
    %v170 = vpop.f32.mrf.mxu0
    %v171 = vadd.f32 0.0, %v170
    %172 = vmatmul.f32.gmra.mxu0 %v61
    %v173 = vpop.f32.mrf.mxu0
    %v174 = vadd.f32 0.0, %v173
    %175 = vmatmul.f32.gmra.mxu0 %v64
    %v176 = vpop.f32.mrf.mxu0
    %v177 = vadd.f32 0.0, %v176
    %178 = vmatmul.f32.gmra.mxu0 %v67
    %v179 = vpop.f32.mrf.mxu0
    %v180 = vadd.f32 0.0, %v179
    %181 = vmatmul.f32.gmra.mxu0 %v70
    %v182 = vpop.f32.mrf.mxu0
    %v183 = vadd.f32 0.0, %v182
    %184 = vmatmul.f32.gmra.mxu0 %v73
    %v185 = vpop.f32.mrf.mxu0
    %v186 = vadd.f32 0.0, %v185
    %187 = vmatmul.f32.gmra.mxu0 %v76
    %v188 = vpop.f32.mrf.mxu0
    %v189 = vadd.f32 0.0, %v188
    %190 = vmatmul.f32.gmra.mxu0 %v79
    %v191 = vpop.f32.mrf.mxu0
    %v192 = vadd.f32 0.0, %v191
    %193 = vmatmul.f32.gmra.mxu0 %v82
    %v194 = vpop.f32.mrf.mxu0
    %v195 = vadd.f32 0.0, %v194
    %196 = vmatmul.f32.gmra.mxu0 %v85
    %v197 = vpop.f32.mrf.mxu0
    %v198 = vadd.f32 0.0, %v197
    %199 = vmatmul.f32.gmra.mxu0 %v88
    %v200 = vpop.f32.mrf.mxu0
    %v201 = vadd.f32 0.0, %v200
    %202 = vmatmul.f32.gmra.mxu0 %v91
    %v203 = vpop.f32.mrf.mxu0
    %v204 = vadd.f32 0.0, %v203
    %205 = vmatmul.f32.gmra.mxu0 %v94
    %v206 = vpop.f32.mrf.mxu0
    %v207 = vadd.f32 0.0, %v206
    %208 = vmatmul.f32.gmra.mxu0 %v97
    %v209 = vpop.f32.mrf.mxu0
    %v210 = vadd.f32 0.0, %v209
    %211 = vmatmul.f32.gmra.mxu0 %v100
    %v212 = vpop.f32.mrf.mxu0
    %v213 = vadd.f32 0.0, %v212
    %214 = vdwg.mxu0
    %v215 = vmul.f32 %v21, %v21
    %v216 = vmul.f32 %v22, %v22
    %v217 = vmul.f32 %v23, %v23
    %v218 = vmul.f32 %v24, %v24
    %v219 = vmul.f32 %v25, %v25
    %v220 = vmul.f32 %v26, %v26
    %v221 = vmul.f32 %v27, %v27
    %v222 = vmul.f32 %v28, %v28
    %v223 = vmul.f32 %v29, %v29
    %v224 = vmul.f32 %v30, %v30
    %v225 = vmul.f32 %v31, %v31
    %v226 = vmul.f32 %v32, %v32
    %v227 = vmul.f32 %v33, %v33
    %v228 = vmul.f32 %v34, %v34
    %v229 = vmul.f32 %v35, %v35
    %v230 = vmul.f32 %v36, %v36
    %v231 = vsel %vm53, %v215, 0.0
    %232 = vadd.xlane.f32.xlu0 %v231
    %v233 = vpop.xlane.xlu0 %232
    %v234 = vsel %vm53, %v216, 0.0
    %235 = vadd.xlane.f32.xlu0 %v234
    %v236 = vpop.xlane.xlu0 %235
    %v237 = vsel %vm53, %v217, 0.0
    %238 = vadd.xlane.f32.xlu0 %v237
    %v239 = vpop.xlane.xlu0 %238
    %v240 = vsel %vm53, %v218, 0.0
    %241 = vadd.xlane.f32.xlu0 %v240
    %v242 = vpop.xlane.xlu0 %241
    %v243 = vsel %vm53, %v219, 0.0
    %244 = vadd.xlane.f32.xlu0 %v243
    %v245 = vpop.xlane.xlu0 %244
    %v246 = vsel %vm53, %v220, 0.0
    %247 = vadd.xlane.f32.xlu0 %v246
    %v248 = vpop.xlane.xlu0 %247
    %v249 = vsel %vm53, %v221, 0.0
    %250 = vadd.xlane.f32.xlu0 %v249
    %v251 = vpop.xlane.xlu0 %250
    %v252 = vsel %vm53, %v222, 0.0
    %253 = vadd.xlane.f32.xlu0 %v252
    %v254 = vpop.xlane.xlu0 %253
    %v255 = vsel %vm53, %v223, 0.0
    %256 = vadd.xlane.f32.xlu0 %v255
    %v257 = vpop.xlane.xlu0 %256
    %v258 = vsel %vm53, %v224, 0.0
    %259 = vadd.xlane.f32.xlu0 %v258
    %v260 = vpop.xlane.xlu0 %259
    %v261 = vsel %vm53, %v225, 0.0
    %262 = vadd.xlane.f32.xlu0 %v261
    %v263 = vpop.xlane.xlu0 %262
    %v264 = vsel %vm53, %v226, 0.0
    %265 = vadd.xlane.f32.xlu0 %v264
    %v266 = vpop.xlane.xlu0 %265
    %v267 = vsel %vm53, %v227, 0.0
    %268 = vadd.xlane.f32.xlu0 %v267
    %v269 = vpop.xlane.xlu0 %268
    %v270 = vsel %vm53, %v228, 0.0
    %271 = vadd.xlane.f32.xlu0 %v270
    %v272 = vpop.xlane.xlu0 %271
    %v273 = vsel %vm53, %v229, 0.0
    %274 = vadd.xlane.f32.xlu0 %v273
    %v275 = vpop.xlane.xlu0 %274
    %v276 = vsel %vm53, %v230, 0.0
    %277 = vadd.xlane.f32.xlu0 %v276
    %v278 = vpop.xlane.xlu0 %277
    %v279 = vmul.f32 %v37, %v37
    %v280 = vmul.f32 %v38, %v38
    %v281 = vmul.f32 %v39, %v39
    %v282 = vmul.f32 %v40, %v40
    %v283 = vmul.f32 %v41, %v41
    %v284 = vmul.f32 %v42, %v42
    %v285 = vmul.f32 %v43, %v43
    %v286 = vmul.f32 %v44, %v44
    %v287 = vmul.f32 %v45, %v45
    %v288 = vmul.f32 %v46, %v46
    %v289 = vmul.f32 %v47, %v47
    %v290 = vmul.f32 %v48, %v48
    %v291 = vmul.f32 %v49, %v49
    %v292 = vmul.f32 %v50, %v50
    %v293 = vmul.f32 %v51, %v51
    %v294 = vmul.f32 %v52, %v52
    %v295 = vsel %vm53, %v279, 0.0
    %296 = vadd.xlane.f32.xlu0 %v295
    %v297 = vpop.xlane.xlu0 %296
    %v298 = vsel %vm53, %v280, 0.0
    %299 = vadd.xlane.f32.xlu0 %v298
    %v300 = vpop.xlane.xlu0 %299
    %v301 = vsel %vm53, %v281, 0.0
    %302 = vadd.xlane.f32.xlu0 %v301
    %v303 = vpop.xlane.xlu0 %302
    %v304 = vsel %vm53, %v282, 0.0
    %305 = vadd.xlane.f32.xlu0 %v304
    %v306 = vpop.xlane.xlu0 %305
    %v307 = vsel %vm53, %v283, 0.0
    %308 = vadd.xlane.f32.xlu0 %v307
    %v309 = vpop.xlane.xlu0 %308
    %v310 = vsel %vm53, %v284, 0.0
    %311 = vadd.xlane.f32.xlu0 %v310
    %v312 = vpop.xlane.xlu0 %311
    %v313 = vsel %vm53, %v285, 0.0
    %314 = vadd.xlane.f32.xlu0 %v313
    %v315 = vpop.xlane.xlu0 %314
    %v316 = vsel %vm53, %v286, 0.0
    %317 = vadd.xlane.f32.xlu0 %v316
    %v318 = vpop.xlane.xlu0 %317
    %v319 = vsel %vm53, %v287, 0.0
    %320 = vadd.xlane.f32.xlu0 %v319
    %v321 = vpop.xlane.xlu0 %320
    %v322 = vsel %vm53, %v288, 0.0
    %323 = vadd.xlane.f32.xlu0 %v322
    %v324 = vpop.xlane.xlu0 %323
    %v325 = vsel %vm53, %v289, 0.0
    %326 = vadd.xlane.f32.xlu0 %v325
    %v327 = vpop.xlane.xlu0 %326
    %v328 = vsel %vm53, %v290, 0.0
    %329 = vadd.xlane.f32.xlu0 %v328
    %v330 = vpop.xlane.xlu0 %329
    %v331 = vsel %vm53, %v291, 0.0
    %332 = vadd.xlane.f32.xlu0 %v331
    %v333 = vpop.xlane.xlu0 %332
    %v334 = vsel %vm53, %v292, 0.0
    %335 = vadd.xlane.f32.xlu0 %v334
    %v336 = vpop.xlane.xlu0 %335
    %v337 = vsel %vm53, %v293, 0.0
    %338 = vadd.xlane.f32.xlu0 %v337
    %v339 = vpop.xlane.xlu0 %338
    %v340 = vsel %vm53, %v294, 0.0
    %341 = vadd.xlane.f32.xlu0 %v340
    %v342 = vpop.xlane.xlu0 %341
    %343 = vxpose.xlu0.b32.start [1/16] %v297, 128
    %344 = vxpose.xlu0.b32.cont [2/16] %v300, 128
    %345 = vxpose.xlu0.b32.cont [3/16] %v303, 128
    %346 = vxpose.xlu0.b32.cont [4/16] %v306, 128
    %347 = vxpose.xlu0.b32.cont [5/16] %v309, 128
    %348 = vxpose.xlu0.b32.cont [6/16] %v312, 128
    %349 = vxpose.xlu0.b32.cont [7/16] %v315, 128
    %350 = vxpose.xlu0.b32.cont [8/16] %v318, 128
    %351 = vxpose.xlu0.b32.cont [9/16] %v321, 128
    %352 = vxpose.xlu0.b32.cont [10/16] %v324, 128
    %353 = vxpose.xlu0.b32.cont [11/16] %v327, 128
    %354 = vxpose.xlu0.b32.cont [12/16] %v330, 128
    %355 = vxpose.xlu0.b32.cont [13/16] %v333, 128
    %356 = vxpose.xlu0.b32.cont [14/16] %v336, 128
    %357 = vxpose.xlu0.b32.cont [15/16] %v339, 128
    %358 = vxpose.xlu0.b32.end [16/16] %v342, 128
    %v359 = vpop.trf.xlu0
    %v360 = vpop.trf.xlu0
    %v361 = vpop.trf.xlu0
    %v362 = vpop.trf.xlu0
    %v363 = vpop.trf.xlu0
    %v364 = vpop.trf.xlu0
    %v365 = vpop.trf.xlu0
    %v366 = vpop.trf.xlu0
    %v367 = vpop.trf.xlu0
    %v368 = vpop.trf.xlu0
    %v369 = vpop.trf.xlu0
    %v370 = vpop.trf.xlu0
    %v371 = vpop.trf.xlu0
    %v372 = vpop.trf.xlu0
    %v373 = vpop.trf.xlu0
    %v374 = vpop.trf.xlu0
    %v375 = vperm.slane %v359, 0
    %v376 = vadd.f32 %v233, %v375
    %v377 = vadd.f32 %v236, %v375
    %v378 = vadd.f32 %v239, %v375
    %v379 = vadd.f32 %v242, %v375
    %v380 = vadd.f32 %v245, %v375
    %v381 = vadd.f32 %v248, %v375
    %v382 = vadd.f32 %v251, %v375
    %v383 = vadd.f32 %v254, %v375
    %v384 = vadd.f32 %v257, %v375
    %v385 = vadd.f32 %v260, %v375
    %v386 = vadd.f32 %v263, %v375
    %v387 = vadd.f32 %v266, %v375
    %v388 = vadd.f32 %v269, %v375
    %v389 = vadd.f32 %v272, %v375
    %v390 = vadd.f32 %v275, %v375
    %v391 = vadd.f32 %v278, %v375
    %v392 = vmul.f32 %v168, 2.0
    %v393 = vmul.f32 %v171, 2.0
    %v394 = vmul.f32 %v174, 2.0
    %v395 = vmul.f32 %v177, 2.0
    %v396 = vmul.f32 %v180, 2.0
    %v397 = vmul.f32 %v183, 2.0
    %v398 = vmul.f32 %v186, 2.0
    %v399 = vmul.f32 %v189, 2.0
    %v400 = vmul.f32 %v192, 2.0
    %v401 = vmul.f32 %v195, 2.0
    %v402 = vmul.f32 %v198, 2.0
    %v403 = vmul.f32 %v201, 2.0
    %v404 = vmul.f32 %v204, 2.0
    %v405 = vmul.f32 %v207, 2.0
    %v406 = vmul.f32 %v210, 2.0
    %v407 = vmul.f32 %v213, 2.0
    %v408 = vsub.f32 %v376, %v392
    %v409 = vsub.f32 %v377, %v393
    %v410 = vsub.f32 %v378, %v394
    %v411 = vsub.f32 %v379, %v395
    %v412 = vsub.f32 %v380, %v396
    %v413 = vsub.f32 %v381, %v397
    %v414 = vsub.f32 %v382, %v398
    %v415 = vsub.f32 %v383, %v399
    %v416 = vsub.f32 %v384, %v400
    %v417 = vsub.f32 %v385, %v401
    %v418 = vsub.f32 %v386, %v402
    %v419 = vsub.f32 %v387, %v403
    %v420 = vsub.f32 %v388, %v404
    %v421 = vsub.f32 %v389, %v405
    %v422 = vsub.f32 %v390, %v406
    %v423 = vsub.f32 %v391, %v407
    %v424 = vmax.f32 %v408, 0.0
    %v425 = vmax.f32 %v409, 0.0
    %v426 = vmax.f32 %v410, 0.0
    %v427 = vmax.f32 %v411, 0.0
    %v428 = vmax.f32 %v412, 0.0
    %v429 = vmax.f32 %v413, 0.0
    %v430 = vmax.f32 %v414, 0.0
    %v431 = vmax.f32 %v415, 0.0
    %v432 = vmax.f32 %v416, 0.0
    %v433 = vmax.f32 %v417, 0.0
    %v434 = vmax.f32 %v418, 0.0
    %v435 = vmax.f32 %v419, 0.0
    %v436 = vmax.f32 %v420, 0.0
    %v437 = vmax.f32 %v421, 0.0
    %v438 = vmax.f32 %v422, 0.0
    %v439 = vmax.f32 %v423, 0.0
    %s440 = smul.u32 0, 128
    %v441 = vlaneseq
    %v442 = vshrl.u32 %v441, 7
    %v443 = vadd.s32 %v442, 8
    %v444 = vadd.s32 %v442, 16
    %v445 = vadd.s32 %v442, 24
    %v446 = vadd.s32 %v442, 32
    %v447 = vadd.s32 %v442, 40
    %v448 = vadd.s32 %v442, 48
    %v449 = vadd.s32 %v442, 56
    %v450 = vadd.s32 %v442, 64
    %v451 = vadd.s32 %v442, 72
    %v452 = vadd.s32 %v442, 80
    %v453 = vadd.s32 %v442, 88
    %v454 = vadd.s32 %v442, 96
    %v455 = vadd.s32 %v442, 104
    %v456 = vadd.s32 %v442, 112
    %v457 = vadd.s32 %v442, 120
    %v458 = vstv %s440
    %v459 = vadd.s32 %v458, %v442
    %v460 = vadd.s32 %v458, %v443
    %v461 = vadd.s32 %v458, %v444
    %v462 = vadd.s32 %v458, %v445
    %v463 = vadd.s32 %v458, %v446
    %v464 = vadd.s32 %v458, %v447
    %v465 = vadd.s32 %v458, %v448
    %v466 = vadd.s32 %v458, %v449
    %v467 = vadd.s32 %v458, %v450
    %v468 = vadd.s32 %v458, %v451
    %v469 = vadd.s32 %v458, %v452
    %v470 = vadd.s32 %v458, %v453
    %v471 = vadd.s32 %v458, %v454
    %v472 = vadd.s32 %v458, %v455
    %v473 = vadd.s32 %v458, %v456
    %v474 = vadd.s32 %v458, %v457
    %v475 = vlaneseq
    %v476 = vand.u32 %v475, 127
    %vm477 = vcmp.ne.s32.totalorder %v459, %v476
    %vm478 = vcmp.ne.s32.totalorder %v460, %v476
    %vm479 = vcmp.ne.s32.totalorder %v461, %v476
    %vm480 = vcmp.ne.s32.totalorder %v462, %v476
    %vm481 = vcmp.ne.s32.totalorder %v463, %v476
    %vm482 = vcmp.ne.s32.totalorder %v464, %v476
    %vm483 = vcmp.ne.s32.totalorder %v465, %v476
    %vm484 = vcmp.ne.s32.totalorder %v466, %v476
    %vm485 = vcmp.ne.s32.totalorder %v467, %v476
    %vm486 = vcmp.ne.s32.totalorder %v468, %v476
    %vm487 = vcmp.ne.s32.totalorder %v469, %v476
    %vm488 = vcmp.ne.s32.totalorder %v470, %v476
    %vm489 = vcmp.ne.s32.totalorder %v471, %v476
    %vm490 = vcmp.ne.s32.totalorder %v472, %v476
    %vm491 = vcmp.ne.s32.totalorder %v473, %v476
    %vm492 = vcmp.ne.s32.totalorder %v474, %v476
    %vm493 = vcmp.lt.s32.totalorder %v459, 8
    %vm494 = vcmp.lt.s32.totalorder %v460, 8
    %vm495 = vcmp.lt.s32.totalorder %v461, 8
    %vm496 = vcmp.lt.s32.totalorder %v462, 8
    %vm497 = vcmp.lt.s32.totalorder %v463, 8
    %vm498 = vcmp.lt.s32.totalorder %v464, 8
    %vm499 = vcmp.lt.s32.totalorder %v465, 8
    %vm500 = vcmp.lt.s32.totalorder %v466, 8
    %vm501 = vcmp.lt.s32.totalorder %v467, 8
    %vm502 = vcmp.lt.s32.totalorder %v468, 8
    %vm503 = vcmp.lt.s32.totalorder %v469, 8
    %vm504 = vcmp.lt.s32.totalorder %v470, 8
    %vm505 = vcmp.lt.s32.totalorder %v471, 8
    %vm506 = vcmp.lt.s32.totalorder %v472, 8
    %vm507 = vcmp.lt.s32.totalorder %v473, 8
    %vm508 = vcmp.lt.s32.totalorder %v474, 8
    %vm509 = vcmp.lt.s32.totalorder %v476, 8
    %vm510 = vmand %vm493, %vm509
    %vm511 = vmand %vm494, %vm509
    %vm512 = vmand %vm495, %vm509
    %vm513 = vmand %vm496, %vm509
    %vm514 = vmand %vm497, %vm509
    %vm515 = vmand %vm498, %vm509
    %vm516 = vmand %vm499, %vm509
    %vm517 = vmand %vm500, %vm509
    %vm518 = vmand %vm501, %vm509
    %vm519 = vmand %vm502, %vm509
    %vm520 = vmand %vm503, %vm509
    %vm521 = vmand %vm504, %vm509
    %vm522 = vmand %vm505, %vm509
    %vm523 = vmand %vm506, %vm509
    %vm524 = vmand %vm507, %vm509
    %vm525 = vmand %vm508, %vm509
    %v526 = vld [vmem:[%s2] sm:$0xff]
    %v527 = vld [vmem:[%s2 + $0x8] sm:$0xff]
    %v528 = vld [vmem:[%s2 + $0x10] sm:$0xff]
    %v529 = vld [vmem:[%s2 + $0x18] sm:$0xff]
    %v530 = vld [vmem:[%s2 + $0x20] sm:$0xff]
    %v531 = vld [vmem:[%s2 + $0x28] sm:$0xff]
    %v532 = vld [vmem:[%s2 + $0x30] sm:$0xff]
    %v533 = vld [vmem:[%s2 + $0x38] sm:$0xff]
    %v534 = vld [vmem:[%s2 + $0x40] sm:$0xff]
    %v535 = vld [vmem:[%s2 + $0x48] sm:$0xff]
    %v536 = vld [vmem:[%s2 + $0x50] sm:$0xff]
    %v537 = vld [vmem:[%s2 + $0x58] sm:$0xff]
    %v538 = vld [vmem:[%s2 + $0x60] sm:$0xff]
    %v539 = vld [vmem:[%s2 + $0x68] sm:$0xff]
    %v540 = vld [vmem:[%s2 + $0x70] sm:$0xff]
    %v541 = vld [vmem:[%s2 + $0x78] sm:$0xff]
    %v542 = vld [vmem:[%s3] sm:$0x1]
    %543 = vset.pattern.permute.xlu0 0
    %544 = vperm.xlu0 %543, %v526
    %v545 = vpop.permute.xlu0 %544
    %546 = vset.pattern.permute.xlu0 0
    %547 = vperm.xlu0 %546, %v527
    %v548 = vpop.permute.xlu0 %547
    %549 = vset.pattern.permute.xlu0 0
    %550 = vperm.xlu0 %549, %v528
    %v551 = vpop.permute.xlu0 %550
    %552 = vset.pattern.permute.xlu0 0
    %553 = vperm.xlu0 %552, %v529
    %v554 = vpop.permute.xlu0 %553
    %555 = vset.pattern.permute.xlu0 0
    %556 = vperm.xlu0 %555, %v530
    %v557 = vpop.permute.xlu0 %556
    %558 = vset.pattern.permute.xlu0 0
    %559 = vperm.xlu0 %558, %v531
    %v560 = vpop.permute.xlu0 %559
    %561 = vset.pattern.permute.xlu0 0
    %562 = vperm.xlu0 %561, %v532
    %v563 = vpop.permute.xlu0 %562
    %564 = vset.pattern.permute.xlu0 0
    %565 = vperm.xlu0 %564, %v533
    %v566 = vpop.permute.xlu0 %565
    %567 = vset.pattern.permute.xlu0 0
    %568 = vperm.xlu0 %567, %v534
    %v569 = vpop.permute.xlu0 %568
    %570 = vset.pattern.permute.xlu0 0
    %571 = vperm.xlu0 %570, %v535
    %v572 = vpop.permute.xlu0 %571
    %573 = vset.pattern.permute.xlu0 0
    %574 = vperm.xlu0 %573, %v536
    %v575 = vpop.permute.xlu0 %574
    %576 = vset.pattern.permute.xlu0 0
    %577 = vperm.xlu0 %576, %v537
    %v578 = vpop.permute.xlu0 %577
    %579 = vset.pattern.permute.xlu0 0
    %580 = vperm.xlu0 %579, %v538
    %v581 = vpop.permute.xlu0 %580
    %582 = vset.pattern.permute.xlu0 0
    %583 = vperm.xlu0 %582, %v539
    %v584 = vpop.permute.xlu0 %583
    %585 = vset.pattern.permute.xlu0 0
    %586 = vperm.xlu0 %585, %v540
    %v587 = vpop.permute.xlu0 %586
    %588 = vset.pattern.permute.xlu0 0
    %589 = vperm.xlu0 %588, %v541
    %v590 = vpop.permute.xlu0 %589
    %v591 = vperm.slane %v542, 0
    %vm592 = vcmp.eq.s32.totalorder %v545, %v591
    %vm593 = vcmp.eq.s32.totalorder %v548, %v591
    %vm594 = vcmp.eq.s32.totalorder %v551, %v591
    %vm595 = vcmp.eq.s32.totalorder %v554, %v591
    %vm596 = vcmp.eq.s32.totalorder %v557, %v591
    %vm597 = vcmp.eq.s32.totalorder %v560, %v591
    %vm598 = vcmp.eq.s32.totalorder %v563, %v591
    %vm599 = vcmp.eq.s32.totalorder %v566, %v591
    %vm600 = vcmp.eq.s32.totalorder %v569, %v591
    %vm601 = vcmp.eq.s32.totalorder %v572, %v591
    %vm602 = vcmp.eq.s32.totalorder %v575, %v591
    %vm603 = vcmp.eq.s32.totalorder %v578, %v591
    %vm604 = vcmp.eq.s32.totalorder %v581, %v591
    %vm605 = vcmp.eq.s32.totalorder %v584, %v591
    %vm606 = vcmp.eq.s32.totalorder %v587, %v591
    %vm607 = vcmp.eq.s32.totalorder %v590, %v591
    %vm608 = vmand %vm477, %vm592
    %vm609 = vmand %vm478, %vm593
    %vm610 = vmand %vm479, %vm594
    %vm611 = vmand %vm480, %vm595
    %vm612 = vmand %vm481, %vm596
    %vm613 = vmand %vm482, %vm597
    %vm614 = vmand %vm483, %vm598
    %vm615 = vmand %vm484, %vm599
    %vm616 = vmand %vm485, %vm600
    %vm617 = vmand %vm486, %vm601
    %vm618 = vmand %vm487, %vm602
    %vm619 = vmand %vm488, %vm603
    %vm620 = vmand %vm489, %vm604
    %vm621 = vmand %vm490, %vm605
    %vm622 = vmand %vm491, %vm606
    %vm623 = vmand %vm492, %vm607
    %vm624 = vmand %vm608, %vm510
    %vm625 = vmand %vm609, %vm511
    %vm626 = vmand %vm610, %vm512
    %vm627 = vmand %vm611, %vm513
    %vm628 = vmand %vm612, %vm514
    %vm629 = vmand %vm613, %vm515
    %vm630 = vmand %vm614, %vm516
    %vm631 = vmand %vm615, %vm517
    %vm632 = vmand %vm616, %vm518
    %vm633 = vmand %vm617, %vm519
    %vm634 = vmand %vm618, %vm520
    %vm635 = vmand %vm619, %vm521
    %vm636 = vmand %vm620, %vm522
    %vm637 = vmand %vm621, %vm523
    %vm638 = vmand %vm622, %vm524
    %vm639 = vmand %vm623, %vm525
    %vm640 = vmxor %vm592, 1
    %vm641 = vmxor %vm593, 1
    %vm642 = vmxor %vm594, 1
    %vm643 = vmxor %vm595, 1
    %vm644 = vmxor %vm596, 1
    %vm645 = vmxor %vm597, 1
    %vm646 = vmxor %vm598, 1
    %vm647 = vmxor %vm599, 1
    %vm648 = vmxor %vm600, 1
    %vm649 = vmxor %vm601, 1
    %vm650 = vmxor %vm602, 1
    %vm651 = vmxor %vm603, 1
    %vm652 = vmxor %vm604, 1
    %vm653 = vmxor %vm605, 1
    %vm654 = vmxor %vm606, 1
    %vm655 = vmxor %vm607, 1
    %vm656 = vmand %vm477, %vm640
    %vm657 = vmand %vm478, %vm641
    %vm658 = vmand %vm479, %vm642
    %vm659 = vmand %vm480, %vm643
    %vm660 = vmand %vm481, %vm644
    %vm661 = vmand %vm482, %vm645
    %vm662 = vmand %vm483, %vm646
    %vm663 = vmand %vm484, %vm647
    %vm664 = vmand %vm485, %vm648
    %vm665 = vmand %vm486, %vm649
    %vm666 = vmand %vm487, %vm650
    %vm667 = vmand %vm488, %vm651
    %vm668 = vmand %vm489, %vm652
    %vm669 = vmand %vm490, %vm653
    %vm670 = vmand %vm491, %vm654
    %vm671 = vmand %vm492, %vm655
    %vm672 = vmand %vm656, %vm510
    %vm673 = vmand %vm657, %vm511
    %vm674 = vmand %vm658, %vm512
    %vm675 = vmand %vm659, %vm513
    %vm676 = vmand %vm660, %vm514
    %vm677 = vmand %vm661, %vm515
    %vm678 = vmand %vm662, %vm516
    %vm679 = vmand %vm663, %vm517
    %vm680 = vmand %vm664, %vm518
    %vm681 = vmand %vm665, %vm519
    %vm682 = vmand %vm666, %vm520
    %vm683 = vmand %vm667, %vm521
    %vm684 = vmand %vm668, %vm522
    %vm685 = vmand %vm669, %vm523
    %vm686 = vmand %vm670, %vm524
    %vm687 = vmand %vm671, %vm525
    %v688 = vadd.f32 %v424, 0.5
    %v689 = vadd.f32 %v425, 0.5
    %v690 = vadd.f32 %v426, 0.5
    %v691 = vadd.f32 %v427, 0.5
    %v692 = vadd.f32 %v428, 0.5
    %v693 = vadd.f32 %v429, 0.5
    %v694 = vadd.f32 %v430, 0.5
    %v695 = vadd.f32 %v431, 0.5
    %v696 = vadd.f32 %v432, 0.5
    %v697 = vadd.f32 %v433, 0.5
    %v698 = vadd.f32 %v434, 0.5
    %v699 = vadd.f32 %v435, 0.5
    %v700 = vadd.f32 %v436, 0.5
    %v701 = vadd.f32 %v437, 0.5
    %v702 = vadd.f32 %v438, 0.5
    %v703 = vadd.f32 %v439, 0.5
    %v704 = vsel %vm624, %v688, -1e+09
    %v705 = vsel %vm625, %v689, -1e+09
    %v706 = vsel %vm626, %v690, -1e+09
    %v707 = vsel %vm627, %v691, -1e+09
    %v708 = vsel %vm628, %v692, -1e+09
    %v709 = vsel %vm629, %v693, -1e+09
    %v710 = vsel %vm630, %v694, -1e+09
    %v711 = vsel %vm631, %v695, -1e+09
    %v712 = vsel %vm632, %v696, -1e+09
    %v713 = vsel %vm633, %v697, -1e+09
    %v714 = vsel %vm634, %v698, -1e+09
    %v715 = vsel %vm635, %v699, -1e+09
    %v716 = vsel %vm636, %v700, -1e+09
    %v717 = vsel %vm637, %v701, -1e+09
    %v718 = vsel %vm638, %v702, -1e+09
    %v719 = vsel %vm639, %v703, -1e+09
    %720 = vst [vmem:[#allocation2] sm:$0xff] %v704
    %721 = vst [vmem:[#allocation2 + $0x8] sm:$0xff] %v705
    %722 = vst [vmem:[#allocation2 + $0x10] sm:$0xff] %v706
    %723 = vst [vmem:[#allocation2 + $0x18] sm:$0xff] %v707
    %724 = vst [vmem:[#allocation2 + $0x20] sm:$0xff] %v708
    %725 = vst [vmem:[#allocation2 + $0x28] sm:$0xff] %v709
    %726 = vst [vmem:[#allocation2 + $0x30] sm:$0xff] %v710
    %727 = vst [vmem:[#allocation2 + $0x38] sm:$0xff] %v711
    %728 = vst [vmem:[#allocation2 + $0x40] sm:$0xff] %v712
    %729 = vst [vmem:[#allocation2 + $0x48] sm:$0xff] %v713
    %730 = vst [vmem:[#allocation2 + $0x50] sm:$0xff] %v714
    %731 = vst [vmem:[#allocation2 + $0x58] sm:$0xff] %v715
    %732 = vst [vmem:[#allocation2 + $0x60] sm:$0xff] %v716
    %733 = vst [vmem:[#allocation2 + $0x68] sm:$0xff] %v717
    %734 = vst [vmem:[#allocation2 + $0x70] sm:$0xff] %v718
    %735 = vst [vmem:[#allocation2 + $0x78] sm:$0xff] %v719
    %v736 = vsel %vm672, %v424, 1e+09
    %v737 = vsel %vm673, %v425, 1e+09
    %v738 = vsel %vm674, %v426, 1e+09
    %v739 = vsel %vm675, %v427, 1e+09
    %v740 = vsel %vm676, %v428, 1e+09
    %v741 = vsel %vm677, %v429, 1e+09
    %v742 = vsel %vm678, %v430, 1e+09
    %v743 = vsel %vm679, %v431, 1e+09
    %v744 = vsel %vm680, %v432, 1e+09
    %v745 = vsel %vm681, %v433, 1e+09
    %v746 = vsel %vm682, %v434, 1e+09
    %v747 = vsel %vm683, %v435, 1e+09
    %v748 = vsel %vm684, %v436, 1e+09
    %v749 = vsel %vm685, %v437, 1e+09
    %v750 = vsel %vm686, %v438, 1e+09
    %v751 = vsel %vm687, %v439, 1e+09
    %752 = vst [vmem:[#allocation4] sm:$0xff] %v736
    %753 = vst [vmem:[#allocation4 + $0x8] sm:$0xff] %v737
    %754 = vst [vmem:[#allocation4 + $0x10] sm:$0xff] %v738
    %755 = vst [vmem:[#allocation4 + $0x18] sm:$0xff] %v739
    %756 = vst [vmem:[#allocation4 + $0x20] sm:$0xff] %v740
    %757 = vst [vmem:[#allocation4 + $0x28] sm:$0xff] %v741
    %758 = vst [vmem:[#allocation4 + $0x30] sm:$0xff] %v742
    %759 = vst [vmem:[#allocation4 + $0x38] sm:$0xff] %v743
    %760 = vst [vmem:[#allocation4 + $0x40] sm:$0xff] %v744
    %761 = vst [vmem:[#allocation4 + $0x48] sm:$0xff] %v745
    %762 = vst [vmem:[#allocation4 + $0x50] sm:$0xff] %v746
    %763 = vst [vmem:[#allocation4 + $0x58] sm:$0xff] %v747
    %764 = vst [vmem:[#allocation4 + $0x60] sm:$0xff] %v748
    %765 = vst [vmem:[#allocation4 + $0x68] sm:$0xff] %v749
    %766 = vst [vmem:[#allocation4 + $0x70] sm:$0xff] %v750
    %767 = vst [vmem:[#allocation4 + $0x78] sm:$0xff] %v751
    // Predicated region
    $region18: #{tpu_custom_call.1} parent=1 // pred_check
      _
    $region19: #{tpu_custom_call.1} parent=1 // pred_check_branch
      %769 = sbr.rel (0) target = $region21
    $region20: #{tpu_custom_call.1} parent=1 // pred_region
      %771 = vsyncadd [#allocation3], 0
      %s772 = sshll.u32 [#allocation2], 4
      %s773 = int_to_ptr.vmem [resolvable:$true] %s772
      %s774 = sshll.u32 %s4, 4
      %s775 = int_to_ptr.hbm [resolvable:$true] %s774
      %780 = dma.vmem_to_hbm [thread:$0]  %s773, 2048, %s775, [#allocation3], 128, 128, 8
    $region21: #{tpu_custom_call.1} parent=1 // pred_fallthru
      _
    // Predicated region
    $region22: #{tpu_custom_call.1} parent=1 // pred_check
      _
    $region23: #{tpu_custom_call.1} parent=1 // pred_check_branch
      %782 = sbr.rel (0) target = $region25
    $region24: #{tpu_custom_call.1} parent=1 // pred_region
      %784 = vsyncadd [#allocation5], 0
      %s785 = sshll.u32 [#allocation4], 4
      %s786 = int_to_ptr.vmem [resolvable:$true] %s785
      %s787 = sshll.u32 %s5, 4
      %s788 = int_to_ptr.hbm [resolvable:$true] %s787
      %793 = dma.vmem_to_hbm [thread:$0]  %s786, 2048, %s788, [#allocation5], 128, 128, 8
    $region25: #{tpu_custom_call.1} parent=1 // pred_fallthru
      _
    // Predicated region
    $region26: #{tpu_custom_call.1} parent=1 // pred_check
      _
    $region27: #{tpu_custom_call.1} parent=1 // pred_check_branch
      %795 = sbr.rel (0) target = $region29
    $region28: #{tpu_custom_call.1} parent=1 // pred_region
      %797 = dma.done [#allocation3], 2048
    $region29: #{tpu_custom_call.1} parent=1 // pred_fallthru
      _
    // Predicated region
    $region30: #{tpu_custom_call.1} parent=1 // pred_check
      _
    $region31: #{tpu_custom_call.1} parent=1 // pred_check_branch
      %799 = sbr.rel (0) target = $region33
    $region32: #{tpu_custom_call.1} parent=1 // pred_region
      %801 = dma.done [#allocation5], 2048
    $region33: #{tpu_custom_call.1} parent=1 // pred_fallthru
      _
    %802 = vsyncpa [#allocation3], 1
    %803 = vsyncpa [#allocation5], 1

</llo_original>
